<compile_context>
chip_gen: v7x
topology: tpu7x:2x2x1
jax: 0.10.0
libtpu: 0.0.40
codegen_flags: <defaults>
</compile_context>

<pallas_src>
import jax
import jax.numpy as jnp
from jax.experimental import pallas as pl
from jax.experimental.pallas import tpu as pltpu


def _scale_mul_kernel(x_ref, s_ref, o_ref):
    # x_ref: (rt, ct); s_ref: (rt, 1) or (1, ct); o_ref: (rt, ct).
    # Promote-then-multiply in the output dtype (matches PyTorch promotion).
    o_ref[...] = x_ref[...].astype(o_ref.dtype) * s_ref[...]


def _vmem_capacity_bytes():
    try:
        return int(pltpu.get_tpu_info().vmem_capacity_bytes)
    except Exception:
        return 64 << 20  # conservative default (v7x per-TensorCore)


def _choose_tiles(rows, cols, in_itemsize, out_itemsize, scale_on_rows,
                  target_tile_bytes):
    """Pick (row_tile, col_tile).  Each dim is either a multiple of the
    sublane/lane packing or the full extent; ragged last blocks are legal."""
    in_itemsize = int(in_itemsize)
    out_itemsize = int(out_itemsize)
    mult = max(8, 32 // max(in_itemsize, 1))   # 8 f32, 16 bf16, 32 int8
    pair = in_itemsize + out_itemsize          # x-tile + out-tile bytes / element

    # ---- lane (column) tile ----
    if scale_on_rows:
        col_coeff = mult * pair                     # per-column bytes at min row stripe
        col_const = mult * 128 * out_itemsize       # (rt, 1) scale pads to 128 lanes
    else:
        col_coeff = mult * pair + 8 * out_itemsize  # (1, ct) scale pads to 8 sublanes
        col_const = 0
    if cols <= 128 or cols * col_coeff + col_const <= target_tile_bytes:
        col_tile = cols                             # full extent: always legal
    else:
        ct = (target_tile_bytes - col_const) // col_coeff
        col_tile = min(cols, max(128, (ct // 128) * 128))

    # ---- sublane (row) tile ----
    if scale_on_rows:
        bytes_per_row = col_tile * pair + 128 * out_itemsize
        avail = target_tile_bytes
    else:
        bytes_per_row = col_tile * pair
        avail = max(mult * bytes_per_row,
                    target_tile_bytes - 8 * col_tile * out_itemsize)
    rt = max(mult, (avail // bytes_per_row // mult) * mult)
    row_tile = rows if rt >= rows else rt

    # Prefer >= 2 grid steps so v7x's two TensorCores both get work
    # (neutral on single-TC v5e/v6e; ~0.35 us/step overhead is negligible).
    n_steps = (-(-rows // row_tile)) * (-(-cols // col_tile))
    if n_steps < 2 and rows >= 2 * mult:
        half = max(mult, ((rows // 2) // mult) * mult)
        row_tile = min(row_tile, half)

    return row_tile, col_tile


def parameter_wrapper_forward(x_nchw, param_c):
    """Pallas TPU forward for ParameterWrapper: x * param, param shape (1, C, 1, 1)."""
    N, C, H, W = x_nchw.shape
    hw = H * W
    out_dtype = jnp.result_type(x_nchw.dtype, param_c.dtype)
    in_itemsize = jnp.dtype(x_nchw.dtype).itemsize
    out_itemsize = jnp.dtype(out_dtype).itemsize

    # Generation-aware budgets (128 MiB VMEM on v5e/v6e, 64 MiB per-TC on v7x).
    if _vmem_capacity_bytes() >= (96 << 20):
        target_tile_bytes = 24 << 20      # ~12 MiB x-tile for f32 in/out
        vmem_limit = 96 << 20
    else:
        target_tile_bytes = 10 << 20      # ~5 MiB x-tile for f32 in/out
        vmem_limit = 48 << 20

    # ---- choose a lane-dense 2-D view (glue stays in plain JAX) ----
    if hw % 128 == 0:
        # One row per (batch, channel) plane; per-row scale (N*C, 1).
        rows, cols = N * C, hw
        scale = jnp.broadcast_to(param_c.reshape(1, C), (N, C)).reshape(rows, 1)
        scale_on_rows = True
    else:
        # Ragged H*W (7x7, 14x14, ...): fold C into the lane axis so the output
        # stays lane-dense; per-column scale (1, C*H*W).
        rows, cols = N, C * hw
        scale = jnp.broadcast_to(param_c.reshape(C, 1), (C, hw)).reshape(1, cols)
        scale_on_rows = False
    scale = scale.astype(out_dtype)
    x2d = x_nchw.reshape(rows, cols)

    row_tile, col_tile = _choose_tiles(rows, cols, in_itemsize, out_itemsize,
                                       scale_on_rows, target_tile_bytes)
    grid = (pl.cdiv(rows, row_tile), pl.cdiv(cols, col_tile))

    if scale_on_rows:
        scale_spec = pl.BlockSpec((row_tile, 1), lambda i, j: (i, 0))
    else:
        scale_spec = pl.BlockSpec((1, col_tile), lambda i, j: (0, j))

    cost = pl.CostEstimate(
        flops=rows * cols,
        transcendentals=0,
        bytes_accessed=rows * cols * in_itemsize        # x read
        + scale.size * out_itemsize                     # scale read
        + rows * cols * out_itemsize,                   # out write
    )

    out2d = pl.pallas_call(
        _scale_mul_kernel,
        out_shape=jax.ShapeDtypeStruct((rows, cols), out_dtype),
        grid_spec=pltpu.PrefetchScalarGridSpec(
            num_scalar_prefetch=0,
            grid=grid,
            in_specs=[
                pl.BlockSpec((row_tile, col_tile), lambda i, j: (i, j)),
                scale_spec,
            ],
            out_specs=pl.BlockSpec((row_tile, col_tile), lambda i, j: (i, j)),
        ),
        compiler_params=pltpu.CompilerParams(
            # All blocks independent -> shard across TensorCores (v7x has 2).
            dimension_semantics=("parallel", "parallel"),
            vmem_limit_bytes=vmem_limit,
        ),
        cost_estimate=cost,
    )(x2d, scale)

    return out2d.reshape(N, C, H, W)


if __name__ == "__main__":
    key = jax.random.PRNGKey(0)

    def check(n, c, h, w):
        kx, kp = jax.random.split(jax.random.fold_in(key, n * 1000 + c * 100 + h))
        x = jax.random.normal(kx, (n, c, h, w), dtype=jnp.float32)
        param = jax.random.normal(kp, (1, c, 1, 1), dtype=jnp.float32)
        out = jax.block_until_ready(parameter_wrapper_forward(x, param))
        ref = x * param
        assert out.shape == ref.shape and out.dtype == ref.dtype, (n, c, h, w)
        assert jnp.allclose(out, ref, atol=1e-6, rtol=1e-6), f"mismatch at {(n, c, h, w)}"

    # Primary small shape implied by the module (NCHW input, (1,C,1,1) param).
    check(2, 4, 16, 16)   # lane-dense path: H*W % 128 == 0
    check(2, 3, 7, 7)     # ragged H*W -> channel folded into the lane axis
    check(5, 4, 16, 8)    # N*C not tile-aligned -> ragged row grid still pipelines

    print("KERNEL_OK")
</pallas_src>

<mosaic_0001>
module attributes {stable_mosaic.version = 11 : i64} {
  func.func @_scale_mul_kernel(%arg0: i32, %arg1: i32, %arg2: memref<8x256xf32, #tpu.memory_space<vmem>>, %arg3: memref<8x1xf32, #tpu.memory_space<vmem>>, %arg4: memref<8x256xf32, #tpu.memory_space<vmem>>) attributes {dimension_semantics = [#tpu.dimension_semantics<parallel>, #tpu.dimension_semantics<parallel>], iteration_bounds = array<i64: 1, 1>, scalar_prefetch = 0 : i64, scratch_operands = 0 : i64, tpu.core_type = #tpu.core_type<tc>, window_params = [{transform_indices = @transform_0, window_bounds = array<i64: 8, 256>}, {transform_indices = @transform_1, window_bounds = array<i64: 8, 1>}, {transform_indices = @transform_2, window_bounds = array<i64: 8, 256>}]} {
    %c0 = arith.constant 0 : index
    %c0_0 = arith.constant 0 : index
    %0 = vector.load %arg2[%c0, %c0_0] : memref<8x256xf32, #tpu.memory_space<vmem>>, vector<8x256xf32>
    %c0_1 = arith.constant 0 : index
    %c0_2 = arith.constant 0 : index
    %1 = vector.load %arg3[%c0_1, %c0_2] : memref<8x1xf32, #tpu.memory_space<vmem>>, vector<8x1xf32>
    %2 = vector.broadcast %1 : vector<8x1xf32> to vector<8x256xf32>
    %3 = arith.mulf %0, %2 : vector<8x256xf32>
    %c0_3 = arith.constant 0 : index
    %c0_4 = arith.constant 0 : index
    %4 = vector.load %arg4[%c0_3, %c0_4] : memref<8x256xf32, #tpu.memory_space<vmem>>, vector<8x256xf32>
    tpu.vector_store %arg4[%c0_3, %c0_4], %3 {strides = array<i32>} : memref<8x256xf32, #tpu.memory_space<vmem>>, vector<8x256xf32>,
    return
  }
  func.func @transform_0(%arg0: i32, %arg1: i32) -> (i32, i32) {
    %c0_i32 = arith.constant 0 : i32
    return %arg0, %arg1 : i32, i32
  }
  func.func @transform_1(%arg0: i32, %arg1: i32) -> (i32, i32) {
    %c0_i32 = arith.constant 0 : i32
    %c0_i32_0 = arith.constant 0 : i32
    return %arg0, %c0_i32 : i32, i32
  }
  func.func @transform_2(%arg0: i32, %arg1: i32) -> (i32, i32) {
    %c0_i32 = arith.constant 0 : i32
    return %arg0, %arg1 : i32, i32
  }
}

</mosaic_0001>

<llo_original>
// kernel: tpu_custom_call.1
$region0: #{tpu_custom_call.1}
  #allocation0 [shape = 'u32[]', space=smem, size = 0x4, offset = 0x4, fixed_abs, tag = 'smem constant byte address 0x4 - core index']
  #allocation1 [shape = 'u32[144,128]{1,0:T(1,128)}', space=vmem, size = 0x12000, scoped, tag = 'internal scratch']
  %s0 = inlined_call_operand.hbm [shape: f32[8,256], index: 0, kind: input, shape index: {}]
  %s1 = inlined_call_operand.vmem [shape: f32[8,1], index: 1, kind: input, shape index: {}]
  %s2 = inlined_call_operand.hbm [shape: f32[8,256], index: 2, kind: output, shape index: {}]
  %s3 = sld [smem:[#allocation0]]
  $region22: #{tpu_custom_call.1} parent=0
    _
  %s5 = ssub.s32 1, %s3
  %s6 = scalar_select 0, %s5, %s3
  $region1: #{tpu_custom_call.1} parent=0
    #allocation2 [shape = 'u8[8192]{0}', space=vmem, size = 0x2000, scoped, tag = 'input window, operand 0, single buffered']
    #allocation3 [shape = 's32[1]{0}', space=sflag, size = 0x4, scoped, tag = 'scoped memory for tpu_custom_call.1']
    #allocation4 [shape = 's32[1]{0}', space=sflag, size = 0x4, scoped, tag = 'scoped memory for tpu_custom_call.1']
    #allocation5 [shape = 'u8[8192]{0}', space=vmem, size = 0x2000, scoped, tag = 'output window, operand 0, single buffered']
    %7 = vsyncpa [#allocation3], 0
    %8 = vsyncpa [#allocation4], 0
    // Predicated region
    $region2: #{tpu_custom_call.1} parent=1 // pred_check
      _
    $region3: #{tpu_custom_call.1} parent=1 // pred_check_branch
      %10 = sbr.rel (0) target = $region5
    $region4: #{tpu_custom_call.1} parent=1 // pred_region
      %s12 = ssub.s32 256, 256
      %13 = vsyncadd [#allocation3], %s12
      %s15 = sshll.u32 [#allocation2], 4
      %s16 = int_to_ptr.vmem [resolvable:$true] %s15
      %18 = dma.hbm_to_vmem [thread:$0]  %s0, 256, %s16, [#allocation3]
    $region5: #{tpu_custom_call.1} parent=1 // pred_fallthru
      _
    // Predicated region
    $region6: #{tpu_custom_call.1} parent=1 // pred_check
      _
    $region7: #{tpu_custom_call.1} parent=1 // pred_check_branch
      %20 = sbr.rel (0) target = $region9
    $region8: #{tpu_custom_call.1} parent=1 // pred_region
      _
    $region9: #{tpu_custom_call.1} parent=1 // pred_fallthru
      _
    // Predicated region
    $region10: #{tpu_custom_call.1} parent=1 // pred_check
      _
    $region11: #{tpu_custom_call.1} parent=1 // pred_check_branch
      %22 = sbr.rel (0) target = $region13
    $region12: #{tpu_custom_call.1} parent=1 // pred_region
      %23 = dma.done [#allocation3], 256
    $region13: #{tpu_custom_call.1} parent=1 // pred_fallthru
      _
    %v24 = vld [vmem:[#allocation2] sm:$0xff]
    %v25 = vld [vmem:[#allocation2 + $0x8] sm:$0xff]
    %v26 = vld [vmem:[%s1] sm:$0xff]
    %28 = vset.pattern.permute.xlu0 0
    %29 = vperm.xlu0 %28, %v26
    %v30 = vpop.permute.xlu0 %29
    %v32 = vmul.f32 %v24, %v30
    %v33 = vmul.f32 %v25, %v30
    %34 = vst [vmem:[#allocation5] sm:$0xff] %v32
    %35 = vst [vmem:[#allocation5 + $0x8] sm:$0xff] %v33
    // Predicated region
    $region14: #{tpu_custom_call.1} parent=1 // pred_check
      _
    $region15: #{tpu_custom_call.1} parent=1 // pred_check_branch
      %37 = sbr.rel (0) target = $region17
    $region16: #{tpu_custom_call.1} parent=1 // pred_region
      %s39 = ssub.s32 256, 256
      %40 = vsyncadd [#allocation4], %s39
      %s42 = sshll.u32 [#allocation5], 4
      %s43 = int_to_ptr.vmem [resolvable:$true] %s42
      %45 = dma.vmem_to_hbm [thread:$0]  %s43, 256, %s2, [#allocation4]
    $region17: #{tpu_custom_call.1} parent=1 // pred_fallthru
      _
    // Predicated region
    $region18: #{tpu_custom_call.1} parent=1 // pred_check
      _
    $region19: #{tpu_custom_call.1} parent=1 // pred_check_branch
      %47 = sbr.rel (0) target = $region21
    $region20: #{tpu_custom_call.1} parent=1 // pred_region
      %48 = dma.done [#allocation4], 256
    $region21: #{tpu_custom_call.1} parent=1 // pred_fallthru
      _
    %49 = vsyncpa [#allocation3], 1
    %50 = vsyncpa [#allocation4], 1

</llo_original>
